<compile_context>
chip_gen: v5e
topology: v5e:2x2
jax: 0.10.0
libtpu: 0.0.40
codegen_flags: <defaults>
</compile_context>

<pallas_src>
import functools

import jax
import jax.numpy as jnp
from jax.experimental import pallas as pl
from jax.experimental.pallas import tpu as pltpu

MEAN = 0.1307
STD = 0.3081
_INV_STD = 1.0 / STD

# Lane widths to try (largest first) so loads/stores are lane-dense.
_LANE_CANDIDATES = (4096, 2048, 1024, 512, 256, 128)
# Below this: a single full-array block (per-step pipeline overhead would
# dominate any split). Above: always >= 2 grid steps.
_SMALL_BYTES = 256 * 1024


def _normalize_kernel(x_ref, o_ref):
    # Elementwise VPU path: load in native dtype, compute in f32 vregs, store
    # back in the output dtype. Rides for free under the HBM DMA.
    x = x_ref[...].astype(jnp.float32)
    o_ref[...] = ((x - jnp.float32(MEAN)) * jnp.float32(_INV_STD)).astype(o_ref.dtype)


@functools.lru_cache(maxsize=None)
def _target_block_bytes():
    """Generation-aware block size: bigger blocks on faster-HBM chips."""
    kind = ""
    try:
        kind = jax.devices()[0].device_kind.lower()
    except Exception:
        pass
    if "v7" in kind or "7x" in kind:
        return 8 << 20   # v7x: ~3.2 TB/s HBM; amortize per-step overhead.
    if "v6" in kind:
        return 4 << 20   # v6e: small gain over 2 MiB, fits 32 MiB default scoped VMEM.
    return 2 << 20       # v5e / unknown: stay well inside the 16 MiB default.


def _round_up(v, m):
    return -(-v // m) * m


def _run_2d(x2d, dtype, rows, lane, itemsize, donate_input=False):
    """Run the streaming kernel over a lane-dense (rows, lane) slab."""
    bytes_per_row = lane * itemsize
    n_bytes = rows * bytes_per_row
    target = _target_block_bytes()

    if n_bytes <= _SMALL_BYTES:
        # Tiny input: one full-array block (always a legal block shape).
        block_rows = rows
    else:
        # >= 2 steps (even count so both v7x TensorCores get equal work),
        # >= 4 steps once there is >= 1 MiB of data, and no block above the
        # generation target.
        min_blocks = 4 if n_bytes >= 4 * _SMALL_BYTES else 2
        nb = max(min_blocks, pl.cdiv(n_bytes, target))
        if nb % 2:
            nb += 1
        block_rows = max(8, _round_up(pl.cdiv(rows, nb), 8))
        block_rows = min(block_rows, rows)

    grid = (pl.cdiv(rows, block_rows),)

    # Scoped VMEM: double-buffered input + output = 4x block bytes (+ slack).
    block_bytes = block_rows * bytes_per_row
    vmem_limit = int(min(48 << 20, max(16 << 20, 4 * block_bytes + (4 << 20))))

    extra = {}
    if donate_input:
        # Only sensible when the caller donates the buffer (e.g. jit with
        # donate_argnums); otherwise XLA inserts a protective copy.
        extra["input_output_aliases"] = {0: 0}

    return pl.pallas_call(
        _normalize_kernel,
        out_shape=jax.ShapeDtypeStruct((rows, lane), dtype),
        grid=grid,
        in_specs=[pl.BlockSpec((block_rows, lane), lambda i: (i, 0))],
        out_specs=pl.BlockSpec((block_rows, lane), lambda i: (i, 0)),
        compiler_params=pltpu.CompilerParams(
            dimension_semantics=("parallel",),
            vmem_limit_bytes=vmem_limit,
        ),
        **extra,
    )(x2d)


def normalizing_transformer(x, donate_input=False):
    """Applies (x - 0.1307) / 0.3081 elementwise via a Pallas TPU kernel.

    Shape is preserved. Floating inputs keep their dtype; integer inputs are
    promoted to float32 (matching torch.div semantics).
    """
    orig_shape = x.shape

    if not jnp.issubdtype(x.dtype, jnp.floating):
        x = x.astype(jnp.float32)
    dtype = x.dtype
    itemsize = jnp.dtype(dtype).itemsize
    n = x.size

    if n == 0:
        return x.reshape(orig_shape)

    x_flat = jnp.ravel(x)
    lane = next((L for L in _LANE_CANDIDATES if n % L == 0), None)

    if lane is not None:
        # Common case: copy-free reshape to a lane-dense slab.
        rows = n // lane
        out2d = _run_2d(x_flat.reshape(rows, lane), dtype, rows, lane, itemsize,
                        donate_input=donate_input)
        return out2d.reshape(orig_shape)

    if n * itemsize <= _SMALL_BYTES:
        # Small ragged input: single (1, n) full-array block -> no padding,
        # no extra HBM traffic.
        out2d = pl.pallas_call(
            _normalize_kernel,
            out_shape=jax.ShapeDtypeStruct((1, n), dtype),
        )(x_flat.reshape(1, n))
        return out2d.reshape(orig_shape)

    # Large ragged input (rare): pad to a lane-dense slab, run the tiled
    # kernel, slice the valid prefix back out.
    # TODO(synk): manual-DMA masked-tail path to avoid the pad/slice copies.
    lane = 1024
    padded = _round_up(n, lane)
    x_pad = jnp.pad(x_flat, (0, padded - n))
    rows = padded // lane
    out2d = _run_2d(x_pad.reshape(rows, lane), dtype, rows, lane, itemsize)
    return out2d.reshape(-1)[:n].reshape(orig_shape)


if __name__ == "__main__":
    key = jax.random.PRNGKey(0)

    # Primary small NCHW batch (single full-array block path).
    x_small = jax.random.uniform(key, (2, 4, 16, 16), dtype=jnp.float32)
    out_small = jax.block_until_ready(normalizing_transformer(x_small))
    ref_small = (x_small - MEAN) / STD
    assert out_small.shape == x_small.shape
    assert out_small.dtype == x_small.dtype
    assert jnp.allclose(out_small, ref_small, atol=1e-5, rtol=1e-5)

    # Larger batch: exercises the multi-block, even "parallel" grid path.
    k1, _ = jax.random.split(key)
    x_big = jax.random.uniform(k1, (8, 3, 160, 160), dtype=jnp.float32)
    out_big = jax.block_until_ready(normalizing_transformer(x_big))
    ref_big = (x_big - MEAN) / STD
    assert jnp.allclose(out_big, ref_big, atol=1e-5, rtol=1e-5)

    # Small awkward size (n % 128 != 0): (1, n) single-block path, no padding.
    k2, _ = jax.random.split(k1)
    x_odd = jax.random.uniform(k2, (3, 7, 11), dtype=jnp.float32)
    out_odd = jax.block_until_ready(normalizing_transformer(x_odd))
    ref_odd = (x_odd - MEAN) / STD
    assert jnp.allclose(out_odd, ref_odd, atol=1e-5, rtol=1e-5)

    # Larger awkward size: exercises the pad/slice fallback with a masked last block.
    k3, _ = jax.random.split(k2)
    x_rag = jax.random.uniform(k3, (5, 7, 13, 201), dtype=jnp.float32)
    out_rag = jax.block_until_ready(normalizing_transformer(x_rag))
    ref_rag = (x_rag - MEAN) / STD
    assert jnp.allclose(out_rag, ref_rag, atol=1e-5, rtol=1e-5)

    print("KERNEL_OK")
</pallas_src>

<mosaic_0001>
module attributes {stable_mosaic.version = 11 : i64} {
  func.func @_normalize_kernel(%arg0: i32, %arg1: memref<1x2048xf32, #tpu.memory_space<vmem>>, %arg2: memref<1x2048xf32, #tpu.memory_space<vmem>>) attributes {dimension_semantics = [#tpu.dimension_semantics<parallel>], iteration_bounds = array<i64: 1>, scalar_prefetch = 0 : i64, scratch_operands = 0 : i64, tpu.core_type = #tpu.core_type<tc>, window_params = [{transform_indices = @transform_0, window_bounds = array<i64: 1, 2048>}, {transform_indices = @transform_1, window_bounds = array<i64: 1, 2048>}]} {
    %c0 = arith.constant 0 : index
    %c0_0 = arith.constant 0 : index
    %0 = vector.load %arg1[%c0, %c0_0] : memref<1x2048xf32, #tpu.memory_space<vmem>>, vector<1x2048xf32>
    %cst = arith.constant 1.307000e-01 : f32
    %1 = vector.broadcast %cst : f32 to vector<1x2048xf32>
    %2 = arith.subf %0, %1 : vector<1x2048xf32>
    %cst_1 = arith.constant 3.24569941 : f32
    %3 = vector.broadcast %cst_1 : f32 to vector<1x2048xf32>
    %4 = arith.mulf %2, %3 : vector<1x2048xf32>
    %c0_2 = arith.constant 0 : index
    %c0_3 = arith.constant 0 : index
    %5 = vector.load %arg2[%c0_2, %c0_3] : memref<1x2048xf32, #tpu.memory_space<vmem>>, vector<1x2048xf32>
    tpu.vector_store %arg2[%c0_2, %c0_3], %4 {strides = array<i32>} : memref<1x2048xf32, #tpu.memory_space<vmem>>, vector<1x2048xf32>,
    return
  }
  func.func @transform_0(%arg0: i32) -> (i32, i32) {
    %c0_i32 = arith.constant 0 : i32
    %c0_i32_0 = arith.constant 0 : i32
    return %arg0, %c0_i32 : i32, i32
  }
  func.func @transform_1(%arg0: i32) -> (i32, i32) {
    %c0_i32 = arith.constant 0 : i32
    %c0_i32_0 = arith.constant 0 : i32
    return %arg0, %c0_i32 : i32, i32
  }
}

</mosaic_0001>

<llo_original>
// kernel: tpu_custom_call.1
$region0: #{tpu_custom_call.1}
  #allocation0 [shape = 'u32[]', space=smem, size = 0x4, offset = 0x4, fixed_abs, tag = 'smem constant byte address 0x4 - core index']
  #allocation1 [shape = 'u32[72,128]{1,0:T(1,128)}', space=vmem, size = 0x9000, scoped, tag = 'internal scratch']
  %s0 = inlined_call_operand.hbm [shape: f32[1,2048], index: 0, kind: input, shape index: {}]
  %s1 = inlined_call_operand.hbm [shape: f32[1,2048], index: 1, kind: output, shape index: {}]
  %s2 = sld [smem:[#allocation0]]
  $region18: #{tpu_custom_call.1} parent=0
    _
  %s4 = ssub.s32 1, %s2
  %s5 = scalar_select 0, %s4, %s2
  $region1: #{tpu_custom_call.1} parent=0
    #allocation2 [shape = 'u8[8192]{0}', space=vmem, size = 0x2000, scoped, tag = 'input window, operand 0, single buffered']
    #allocation3 [shape = 's32[1]{0}', space=sflag, size = 0x4, scoped, tag = 'scoped memory for tpu_custom_call.1']
    #allocation4 [shape = 's32[1]{0}', space=sflag, size = 0x4, scoped, tag = 'scoped memory for tpu_custom_call.1']
    #allocation5 [shape = 'u8[8192]{0}', space=vmem, size = 0x2000, scoped, tag = 'output window, operand 0, single buffered']
    %6 = vsyncpa [#allocation3], 0
    %7 = vsyncpa [#allocation4], 0
    // Predicated region
    $region2: #{tpu_custom_call.1} parent=1 // pred_check
      _
    $region3: #{tpu_custom_call.1} parent=1 // pred_check_branch
      %9 = sbr.rel (0) target = $region5
    $region4: #{tpu_custom_call.1} parent=1 // pred_region
      %11 = vsyncadd [#allocation3], 0
      %s13 = sshll.u32 %s0, 4
      %s14 = int_to_ptr.hbm [resolvable:$true] %s13
      %s15 = sshll.u32 [#allocation2], 4
      %s16 = int_to_ptr.vmem [resolvable:$true] %s15
      %18 = dma.hbm_to_vmem [thread:$0]  %s14, 256, %s16, [#allocation3]
    $region5: #{tpu_custom_call.1} parent=1 // pred_fallthru
      _
    // Predicated region
    $region6: #{tpu_custom_call.1} parent=1 // pred_check
      _
    $region7: #{tpu_custom_call.1} parent=1 // pred_check_branch
      %20 = sbr.rel (0) target = $region9
    $region8: #{tpu_custom_call.1} parent=1 // pred_region
      %22 = dma.done [#allocation3], 256
    $region9: #{tpu_custom_call.1} parent=1 // pred_fallthru
      _
    %v23 = vld [vmem:[#allocation2] sm:$0xff]
    %v24 = vld [vmem:[#allocation2 + $0x8] sm:$0xff]
    %v25 = vsub.f32 %v23, 0.1307
    %v26 = vsub.f32 %v24, 0.1307
    %v27 = vmul.f32 %v25, 3.2456994
    %v28 = vmul.f32 %v26, 3.2456994
    %29 = vst [vmem:[#allocation5] sm:$0xff] %v27
    %30 = vst [vmem:[#allocation5 + $0x8] sm:$0xff] %v28
    // Predicated region
    $region10: #{tpu_custom_call.1} parent=1 // pred_check
      _
    $region11: #{tpu_custom_call.1} parent=1 // pred_check_branch
      %32 = sbr.rel (0) target = $region13
    $region12: #{tpu_custom_call.1} parent=1 // pred_region
      %34 = vsyncadd [#allocation4], 0
      %s36 = sshll.u32 [#allocation5], 4
      %s37 = int_to_ptr.vmem [resolvable:$true] %s36
      %s38 = sshll.u32 %s1, 4
      %s39 = int_to_ptr.hbm [resolvable:$true] %s38
      %41 = dma.vmem_to_hbm [thread:$0]  %s37, 256, %s39, [#allocation4]
    $region13: #{tpu_custom_call.1} parent=1 // pred_fallthru
      _
    // Predicated region
    $region14: #{tpu_custom_call.1} parent=1 // pred_check
      _
    $region15: #{tpu_custom_call.1} parent=1 // pred_check_branch
      %43 = sbr.rel (0) target = $region17
    $region16: #{tpu_custom_call.1} parent=1 // pred_region
      %45 = dma.done [#allocation4], 256
    $region17: #{tpu_custom_call.1} parent=1 // pred_fallthru
      _
    %46 = vsyncpa [#allocation3], 1
    %47 = vsyncpa [#allocation4], 1

</llo_original>
